<compile_context>
chip_gen: v7x
topology: tpu7x:2x2x1
jax: 0.10.0
libtpu: 0.0.40
codegen_flags: <defaults>
</compile_context>

<pallas_src>
import math
import functools

import jax
import jax.numpy as jnp
from jax.experimental import pallas as pl
from jax.experimental.pallas import tpu as pltpu


# ---------------------------------------------------------------------------
# helpers
# ---------------------------------------------------------------------------
def _pick_tile(dim: int, cap: int, align: int) -> int:
    """Largest tile <= cap that divides `dim` and is a multiple of `align`.
    Falls back to the full dim (always a legal block size on TPU)."""
    if dim <= cap:
        return dim
    t = (cap // align) * align
    while t >= align:
        if dim % t == 0:
            return t
        t -= align
    return dim


def _gelu(x):
    # tanh-approx GELU (lowers cleanly on Mosaic EUP).
    # TODO(synk): PyTorch nn.GELU() default is the exact erf-based GELU;
    # tanh approximation used here (max deviation ~1e-3).
    c = math.sqrt(2.0 / math.pi)
    return 0.5 * x * (1.0 + jnp.tanh(c * (x + 0.044715 * x * x * x)))


# ---------------------------------------------------------------------------
# LayerNorm kernel
# ---------------------------------------------------------------------------
def _layernorm_kernel(x_ref, g_ref, b_ref, o_ref):
    x = x_ref[...].astype(jnp.float32)
    mu = jnp.mean(x, axis=-1, keepdims=True)
    xc = x - mu
    var = jnp.mean(xc * xc, axis=-1, keepdims=True)
    inv = jax.lax.rsqrt(var + 1e-5)
    y = xc * inv * g_ref[...].astype(jnp.float32) + b_ref[...].astype(jnp.float32)
    o_ref[...] = y.astype(o_ref.dtype)


def layer_norm(x2d, gamma, beta):
    M, D = x2d.shape
    tm = _pick_tile(M, 512, 8)
    grid = (M // tm,)
    return pl.pallas_call(
        _layernorm_kernel,
        out_shape=jax.ShapeDtypeStruct((M, D), x2d.dtype),
        grid_spec=pltpu.PrefetchScalarGridSpec(
            num_scalar_prefetch=0,
            grid=grid,
            in_specs=[
                pl.BlockSpec((tm, D), lambda i: (i, 0)),
                pl.BlockSpec((1, D), lambda i: (0, 0)),
                pl.BlockSpec((1, D), lambda i: (0, 0)),
            ],
            out_specs=pl.BlockSpec((tm, D), lambda i: (i, 0)),
        ),
        compiler_params=pltpu.CompilerParams(dimension_semantics=("parallel",)),
    )(x2d, gamma.reshape(1, D), beta.reshape(1, D))


# ---------------------------------------------------------------------------
# Linear kernel (tiled matmul, fused bias / GELU / residual epilogue)
# ---------------------------------------------------------------------------
def _make_linear_kernel(has_bias, has_res, activation):
    def kernel(*refs):
        x_ref, w_ref = refs[0], refs[1]
        idx = 2
        b_ref = None
        r_ref = None
        if has_bias:
            b_ref = refs[idx]
            idx += 1
        if has_res:
            r_ref = refs[idx]
            idx += 1
        o_ref = refs[idx]
        acc_ref = refs[idx + 1]

        @pl.when(pl.program_id(2) == 0)
        def _():
            acc_ref[...] = jnp.zeros_like(acc_ref)

        acc_ref[...] += jnp.dot(
            x_ref[...], w_ref[...], preferred_element_type=jnp.float32
        )

        @pl.when(pl.program_id(2) == pl.num_programs(2) - 1)
        def _():
            y = acc_ref[...]
            if has_bias:
                y = y + b_ref[...].astype(jnp.float32)
            if activation == "gelu":
                y = _gelu(y)
            if has_res:
                y = y + r_ref[...].astype(jnp.float32)
            o_ref[...] = y.astype(o_ref.dtype)

    return kernel


def linear(x2d, w, b=None, activation=None, residual=None):
    """out = act(x2d @ w + b) + residual, with the epilogue fused in-kernel."""
    M, K = x2d.shape
    Kw, N = w.shape
    assert K == Kw
    tm = _pick_tile(M, 256, 8)
    tn = _pick_tile(N, 256, 128)
    tk = _pick_tile(K, 512, 128)
    grid = (M // tm, N // tn, K // tk)

    in_specs = [
        pl.BlockSpec((tm, tk), lambda i, j, k: (i, k)),
        pl.BlockSpec((tk, tn), lambda i, j, k: (k, j)),
    ]
    args = [x2d, w]
    if b is not None:
        in_specs.append(pl.BlockSpec((1, tn), lambda i, j, k: (0, j)))
        args.append(b.reshape(1, N))
    if residual is not None:
        in_specs.append(pl.BlockSpec((tm, tn), lambda i, j, k: (i, j)))
        args.append(residual)

    kernel = _make_linear_kernel(
        has_bias=b is not None, has_res=residual is not None, activation=activation
    )
    return pl.pallas_call(
        kernel,
        out_shape=jax.ShapeDtypeStruct((M, N), x2d.dtype),
        grid_spec=pltpu.PrefetchScalarGridSpec(
            num_scalar_prefetch=0,
            grid=grid,
            in_specs=in_specs,
            out_specs=pl.BlockSpec((tm, tn), lambda i, j, k: (i, j)),
            scratch_shapes=[pltpu.VMEM((tm, tn), jnp.float32)],
        ),
        compiler_params=pltpu.CompilerParams(
            dimension_semantics=("parallel", "parallel", "arbitrary")
        ),
    )(*args)


# ---------------------------------------------------------------------------
# Causal self-attention core kernel (per batch*head)
# ---------------------------------------------------------------------------
def _attn_kernel(q_ref, k_ref, v_ref, o_ref, *, scale):
    q = q_ref[...].astype(jnp.float32)  # (1, T, DH)
    k = k_ref[...].astype(jnp.float32)
    v = v_ref[...].astype(jnp.float32)

    s = jnp.einsum("btd,bsd->bts", q, k, preferred_element_type=jnp.float32) * scale
    row = jax.lax.broadcasted_iota(jnp.int32, s.shape, 1)
    col = jax.lax.broadcasted_iota(jnp.int32, s.shape, 2)
    s = jnp.where(col <= row, s, -1e30)

    m = jnp.max(s, axis=-1, keepdims=True)
    e = jnp.exp(s - m)
    p = e / jnp.sum(e, axis=-1, keepdims=True)

    y = jnp.einsum("bts,bsd->btd", p, v, preferred_element_type=jnp.float32)
    o_ref[...] = y.astype(o_ref.dtype)


def causal_attention(q, k, v):
    """q, k, v: (B*NH, T, DH) -> (B*NH, T, DH), causal softmax attention."""
    BH, T, DH = q.shape
    scale = 1.0 / math.sqrt(DH)
    kernel = functools.partial(_attn_kernel, scale=scale)
    # TODO(synk): direct (T, T) scores per head; for long contexts switch to a
    # flash-style kv-tiled online-softmax grid.
    return pl.pallas_call(
        kernel,
        out_shape=jax.ShapeDtypeStruct((BH, T, DH), q.dtype),
        grid_spec=pltpu.PrefetchScalarGridSpec(
            num_scalar_prefetch=0,
            grid=(BH,),
            in_specs=[
                pl.BlockSpec((1, T, DH), lambda h: (h, 0, 0)),
                pl.BlockSpec((1, T, DH), lambda h: (h, 0, 0)),
                pl.BlockSpec((1, T, DH), lambda h: (h, 0, 0)),
            ],
            out_specs=pl.BlockSpec((1, T, DH), lambda h: (h, 0, 0)),
        ),
        compiler_params=pltpu.CompilerParams(dimension_semantics=("parallel",)),
    )(q, k, v)


# ---------------------------------------------------------------------------
# GPT forward (Pallas) and pure-JAX reference
# ---------------------------------------------------------------------------
def gpt_forward(params, x, num_heads):
    B, T, D = x.shape
    NH = num_heads
    DH = D // NH

    def to_heads(t):  # (B, T, D) -> (B*NH, T, DH)
        return t.reshape(B, T, NH, DH).transpose(0, 2, 1, 3).reshape(B * NH, T, DH)

    h = x
    for layer in params["layers"]:
        # --- attention sub-block:  x = x + attn(ln1(x)) ---
        h2d = h.reshape(B * T, D)
        ln1 = layer_norm(h2d, layer["ln1_g"], layer["ln1_b"])
        qkv = linear(ln1, layer["w_qkv"])                      # (B*T, 3D), no bias
        q, k, v = jnp.split(qkv.reshape(B, T, 3 * D), 3, axis=-1)
        y = causal_attention(to_heads(q), to_heads(k), to_heads(v))
        y = y.reshape(B, NH, T, DH).transpose(0, 2, 1, 3).reshape(B * T, D)
        h2d = linear(y, layer["w_o"], layer["b_o"], residual=h2d)  # fused +residual

        # --- MLP sub-block:  x = x + mlp(ln2(x)) ---
        ln2 = layer_norm(h2d, layer["ln2_g"], layer["ln2_b"])
        hid = linear(ln2, layer["w_fc"], layer["b_fc"], activation="gelu")
        h2d = linear(hid, layer["w_proj"], layer["b_proj"], residual=h2d)
        h = h2d.reshape(B, T, D)

    out = layer_norm(h.reshape(B * T, D), params["lnf_g"], params["lnf_b"])
    return out.reshape(B, T, D)


def _ref_layer_norm(x, g, b):
    mu = jnp.mean(x, axis=-1, keepdims=True)
    xc = x - mu
    var = jnp.mean(xc * xc, axis=-1, keepdims=True)
    return xc * jax.lax.rsqrt(var + 1e-5) * g + b


def gpt_reference(params, x, num_heads):
    B, T, D = x.shape
    NH = num_heads
    DH = D // NH
    hi = jax.lax.Precision.HIGHEST

    h = x
    for layer in params["layers"]:
        ln1 = _ref_layer_norm(h, layer["ln1_g"], layer["ln1_b"])
        qkv = jnp.einsum("btd,de->bte", ln1, layer["w_qkv"], precision=hi)
        q, k, v = jnp.split(qkv, 3, axis=-1)
        q = q.reshape(B, T, NH, DH).transpose(0, 2, 1, 3)
        k = k.reshape(B, T, NH, DH).transpose(0, 2, 1, 3)
        v = v.reshape(B, T, NH, DH).transpose(0, 2, 1, 3)
        s = jnp.einsum("bhtd,bhsd->bhts", q, k, precision=hi) / math.sqrt(DH)
        mask = jnp.tril(jnp.ones((T, T), bool))
        s = jnp.where(mask[None, None], s, -1e30)
        p = jax.nn.softmax(s, axis=-1)
        y = jnp.einsum("bhts,bhsd->bhtd", p, v, precision=hi)
        y = y.transpose(0, 2, 1, 3).reshape(B, T, D)
        h = h + jnp.einsum("btd,de->bte", y, layer["w_o"], precision=hi) + layer["b_o"]

        ln2 = _ref_layer_norm(h, layer["ln2_g"], layer["ln2_b"])
        hid = _gelu(jnp.einsum("btd,de->bte", ln2, layer["w_fc"], precision=hi)
                    + layer["b_fc"])
        h = h + jnp.einsum("bte,ed->btd", hid, layer["w_proj"], precision=hi) \
              + layer["b_proj"]

    return _ref_layer_norm(h, params["lnf_g"], params["lnf_b"])


# ---------------------------------------------------------------------------
# parameters
# ---------------------------------------------------------------------------
def init_params(key, embed_dim, num_layers):
    D = embed_dim
    layers = []
    for _ in range(num_layers):
        key, k0, k1, k2, k3, k4, k5, k6, k7 = jax.random.split(key, 9)
        layers.append({
            "ln1_g": 1.0 + 0.05 * jax.random.normal(k4, (D,), jnp.float32),
            "ln1_b": 0.05 * jax.random.normal(k5, (D,), jnp.float32),
            "w_qkv": 0.02 * jax.random.normal(k0, (D, 3 * D), jnp.float32),
            "w_o": 0.02 * jax.random.normal(k1, (D, D), jnp.float32),
            "b_o": 0.02 * jax.random.normal(k6, (D,), jnp.float32),
            "ln2_g": 1.0 + 0.05 * jax.random.normal(k7, (D,), jnp.float32),
            "ln2_b": jnp.zeros((D,), jnp.float32),
            "w_fc": 0.02 * jax.random.normal(k2, (D, 4 * D), jnp.float32),
            "b_fc": jnp.zeros((4 * D,), jnp.float32),
            "w_proj": 0.02 * jax.random.normal(k3, (4 * D, D), jnp.float32),
            "b_proj": jnp.zeros((D,), jnp.float32),
        })
    key, kg, kb = jax.random.split(key, 3)
    return {
        "layers": layers,
        "lnf_g": 1.0 + 0.05 * jax.random.normal(kg, (D,), jnp.float32),
        "lnf_b": 0.05 * jax.random.normal(kb, (D,), jnp.float32),
    }


# ---------------------------------------------------------------------------
# main
# ---------------------------------------------------------------------------
if __name__ == "__main__":
    B, T, D = 2, 8, 32          # batch, context_length, embed_dim
    NUM_HEADS, NUM_LAYERS = 4, 2

    key = jax.random.PRNGKey(0)
    key, kx, kp = jax.random.split(key, 3)
    x = jax.random.normal(kx, (B, T, D), jnp.float32)
    params = init_params(kp, D, NUM_LAYERS)

    out = gpt_forward(params, x, NUM_HEADS)
    out = jax.block_until_ready(out)

    ref = gpt_reference(params, x, NUM_HEADS)
    assert out.shape == (B, T, D)
    assert bool(jnp.all(jnp.isfinite(out))), "non-finite values in output"
    assert jnp.allclose(out, ref, atol=1e-3, rtol=1e-3), (
        "mismatch vs reference: max abs diff = "
        f"{float(jnp.max(jnp.abs(out - ref)))}"
    )

    print("KERNEL_OK")
</pallas_src>

<mosaic_0001>
module attributes {stable_mosaic.version = 11 : i64} {
  func.func @_layernorm_kernel(%arg0: i32, %arg1: memref<16x32xf32, #tpu.memory_space<vmem>>, %arg2: memref<1x32xf32, #tpu.memory_space<vmem>>, %arg3: memref<1x32xf32, #tpu.memory_space<vmem>>, %arg4: memref<16x32xf32, #tpu.memory_space<vmem>>) attributes {dimension_semantics = [#tpu.dimension_semantics<parallel>], iteration_bounds = array<i64: 1>, scalar_prefetch = 0 : i64, scratch_operands = 0 : i64, tpu.core_type = #tpu.core_type<tc>, window_params = [{transform_indices = @transform_0, window_bounds = array<i64: 16, 32>}, {pipeline_mode = #tpu.pipeline_mode<synchronous>, transform_indices = @transform_1, window_bounds = array<i64: 1, 32>}, {pipeline_mode = #tpu.pipeline_mode<synchronous>, transform_indices = @transform_2, window_bounds = array<i64: 1, 32>}, {transform_indices = @transform_3, window_bounds = array<i64: 16, 32>}]} {
    %c0 = arith.constant 0 : index
    %c0_0 = arith.constant 0 : index
    %0 = vector.load %arg1[%c0, %c0_0] : memref<16x32xf32, #tpu.memory_space<vmem>>, vector<16x32xf32>
    %cst = arith.constant dense<0.000000e+00> : vector<16xf32>
    %1 = vector.multi_reduction <add>, %0, %cst [1] : vector<16x32xf32> to vector<16xf32>
    %2 = vector.shape_cast %1 : vector<16xf32> to vector<16x1xf32>
    %cst_1 = arith.constant 3.200000e+01 : f32
    %3 = vector.broadcast %cst_1 : f32 to vector<16x1xf32>
    %4 = arith.divf %2, %3 : vector<16x1xf32>
    %5 = vector.broadcast %4 : vector<16x1xf32> to vector<16x32xf32>
    %6 = arith.subf %0, %5 : vector<16x32xf32>
    %7 = arith.mulf %6, %6 : vector<16x32xf32>
    %cst_2 = arith.constant dense<0.000000e+00> : vector<16xf32>
    %8 = vector.multi_reduction <add>, %7, %cst_2 [1] : vector<16x32xf32> to vector<16xf32>
    %9 = vector.shape_cast %8 : vector<16xf32> to vector<16x1xf32>
    %cst_3 = arith.constant 3.200000e+01 : f32
    %10 = vector.broadcast %cst_3 : f32 to vector<16x1xf32>
    %11 = arith.divf %9, %10 : vector<16x1xf32>
    %cst_4 = arith.constant 9.99999974E-6 : f32
    %12 = vector.broadcast %cst_4 : f32 to vector<16x1xf32>
    %13 = arith.addf %11, %12 : vector<16x1xf32>
    %14 = math.rsqrt %13 : vector<16x1xf32>
    %15 = vector.broadcast %14 : vector<16x1xf32> to vector<16x32xf32>
    %16 = arith.mulf %6, %15 : vector<16x32xf32>
    %c0_5 = arith.constant 0 : index
    %c0_6 = arith.constant 0 : index
    %17 = vector.load %arg2[%c0_5, %c0_6] : memref<1x32xf32, #tpu.memory_space<vmem>>, vector<1x32xf32>
    %18 = vector.broadcast %17 : vector<1x32xf32> to vector<16x32xf32>
    %19 = arith.mulf %16, %18 : vector<16x32xf32>
    %c0_7 = arith.constant 0 : index
    %c0_8 = arith.constant 0 : index
    %20 = vector.load %arg3[%c0_7, %c0_8] : memref<1x32xf32, #tpu.memory_space<vmem>>, vector<1x32xf32>
    %21 = vector.broadcast %20 : vector<1x32xf32> to vector<16x32xf32>
    %22 = arith.addf %19, %21 : vector<16x32xf32>
    %c0_9 = arith.constant 0 : index
    %c0_10 = arith.constant 0 : index
    %23 = vector.load %arg4[%c0_9, %c0_10] : memref<16x32xf32, #tpu.memory_space<vmem>>, vector<16x32xf32>
    tpu.vector_store %arg4[%c0_9, %c0_10], %22 {strides = array<i32>} : memref<16x32xf32, #tpu.memory_space<vmem>>, vector<16x32xf32>,
    return
  }
  func.func @transform_0(%arg0: i32) -> (i32, i32) {
    %c0_i32 = arith.constant 0 : i32
    %c0_i32_0 = arith.constant 0 : i32
    return %arg0, %c0_i32 : i32, i32
  }
  func.func @transform_1(%arg0: i32) -> (i32, i32) {
    %c0_i32 = arith.constant 0 : i32
    %c0_i32_0 = arith.constant 0 : i32
    %c0_i32_1 = arith.constant 0 : i32
    return %c0_i32, %c0_i32_0 : i32, i32
  }
  func.func @transform_2(%arg0: i32) -> (i32, i32) {
    %c0_i32 = arith.constant 0 : i32
    %c0_i32_0 = arith.constant 0 : i32
    %c0_i32_1 = arith.constant 0 : i32
    return %c0_i32, %c0_i32_0 : i32, i32
  }
  func.func @transform_3(%arg0: i32) -> (i32, i32) {
    %c0_i32 = arith.constant 0 : i32
    %c0_i32_0 = arith.constant 0 : i32
    return %arg0, %c0_i32 : i32, i32
  }
}

</mosaic_0001>

<llo_original>
// kernel: tpu_custom_call.1
$region0: #{tpu_custom_call.1}
  #allocation0 [shape = 'u32[]', space=smem, size = 0x4, offset = 0x4, fixed_abs, tag = 'smem constant byte address 0x4 - core index']
  #allocation1 [shape = 'u32[144,128]{1,0:T(1,128)}', space=vmem, size = 0x12000, scoped, tag = 'internal scratch']
  %s0 = inlined_call_operand.hbm [shape: f32[16,32], index: 0, kind: input, shape index: {}]
  %s1 = inlined_call_operand.vmem [shape: f32[1,32], index: 1, kind: input, shape index: {}]
  %s2 = inlined_call_operand.vmem [shape: f32[1,32], index: 2, kind: input, shape index: {}]
  %s3 = inlined_call_operand.hbm [shape: f32[16,32], index: 3, kind: output, shape index: {}]
  %s4 = sld [smem:[#allocation0]]
  $region26: #{tpu_custom_call.1} parent=0
    _
  %s6 = ssub.s32 1, %s4
  %s7 = scalar_select 0, %s6, %s4
  $region1: #{tpu_custom_call.1} parent=0
    #allocation2 [shape = 'u8[8192]{0}', space=vmem, size = 0x2000, scoped, tag = 'input window, operand 0, single buffered']
    #allocation3 [shape = 's32[1]{0}', space=sflag, size = 0x4, scoped, tag = 'scoped memory for tpu_custom_call.1']
    #allocation4 [shape = 's32[1]{0}', space=sflag, size = 0x4, scoped, tag = 'scoped memory for tpu_custom_call.1']
    #allocation5 [shape = 'u8[8192]{0}', space=vmem, size = 0x2000, scoped, tag = 'output window, operand 0, single buffered']
    %8 = vsyncpa [#allocation3], 0
    %9 = vsyncpa [#allocation4], 0
    // Predicated region
    $region2: #{tpu_custom_call.1} parent=1 // pred_check
      _
    $region3: #{tpu_custom_call.1} parent=1 // pred_check_branch
      %11 = sbr.rel (0) target = $region5
    $region4: #{tpu_custom_call.1} parent=1 // pred_region
      %s13 = ssub.s32 256, 256
      %14 = vsyncadd [#allocation3], %s13
      %s15 = sshll.u32 [#allocation2], 4
      %s16 = int_to_ptr.vmem [resolvable:$true] %s15
      %21 = dma.hbm_to_vmem [thread:$0]  %s0, 256, %s16, [#allocation3], 128, 128, 8
    $region5: #{tpu_custom_call.1} parent=1 // pred_fallthru
      _
    // Predicated region
    $region6: #{tpu_custom_call.1} parent=1 // pred_check
      _
    $region7: #{tpu_custom_call.1} parent=1 // pred_check_branch
      %23 = sbr.rel (0) target = $region9
    $region8: #{tpu_custom_call.1} parent=1 // pred_region
      _
    $region9: #{tpu_custom_call.1} parent=1 // pred_fallthru
      _
    // Predicated region
    $region10: #{tpu_custom_call.1} parent=1 // pred_check
      _
    $region11: #{tpu_custom_call.1} parent=1 // pred_check_branch
      %25 = sbr.rel (0) target = $region13
    $region12: #{tpu_custom_call.1} parent=1 // pred_region
      _
    $region13: #{tpu_custom_call.1} parent=1 // pred_fallthru
      _
    // Predicated region
    $region14: #{tpu_custom_call.1} parent=1 // pred_check
      _
    $region15: #{tpu_custom_call.1} parent=1 // pred_check_branch
      %27 = sbr.rel (0) target = $region17
    $region16: #{tpu_custom_call.1} parent=1 // pred_region
      %28 = dma.done [#allocation3], 256
    $region17: #{tpu_custom_call.1} parent=1 // pred_fallthru
      _
    %v29 = vld [vmem:[#allocation2] sm:$0xff]
    %v30 = vld [vmem:[#allocation2 + $0x8] sm:$0xff]
    %vm31 = vcmask 261120
    %v32 = vsel %vm31, %v29, 0.0
    %33 = vadd.xlane.f32.xlu0 %v32
    %v34 = vpop.xlane.xlu0 %33
    %v35 = vsel %vm31, %v30, 0.0
    %36 = vadd.xlane.f32.xlu0 %v35
    %v37 = vpop.xlane.xlu0 %36
    %v38 = vrcp.pop 32.0
    %v39 = vmul.f32 %v34, %v38
    %v40 = vmul.f32 %v37, %v38
    %v41 = vsub.f32 %v29, %v39
    %v42 = vsub.f32 %v30, %v40
    %v43 = vmul.f32 %v41, %v41
    %v44 = vmul.f32 %v42, %v42
    %v45 = vsel %vm31, %v43, 0.0
    %46 = vadd.xlane.f32.xlu0 %v45
    %v47 = vpop.xlane.xlu0 %46
    %v48 = vsel %vm31, %v44, 0.0
    %49 = vadd.xlane.f32.xlu0 %v48
    %v50 = vpop.xlane.xlu0 %49
    %v51 = vmul.f32 %v47, %v38
    %v52 = vmul.f32 %v50, %v38
    %v53 = vadd.f32 %v51, 1e-05
    %v54 = vadd.f32 %v52, 1e-05
    %v55 = vrsqrt.pop %v53
    %v56 = vrsqrt.pop %v54
    %v57 = vmul.f32 %v41, %v55
    %v58 = vmul.f32 %v42, %v56
    %v59 = vld [vmem:[%s1] sm:$0x1]
    %v61 = vlaneseq
    %v62 = vshrl.u32 %v61, 7
    %v63 = vsub.s32 0, %v62
    %v64 = vrot.slane %v59, %v63
    %v66 = vmul.f32 %v57, %v64
    %v67 = vmul.f32 %v58, %v64
    %v68 = vld [vmem:[%s2] sm:$0x1]
    %v70 = vlaneseq
    %v71 = vshrl.u32 %v70, 7
    %v72 = vsub.s32 0, %v71
    %v73 = vrot.slane %v68, %v72
    %v75 = vadd.f32 %v66, %v73
    %v76 = vadd.f32 %v67, %v73
    %77 = vst.msk [vmem:[#allocation5] sm:$0xff] %vm31, %v75
    %78 = vst.msk [vmem:[#allocation5 + $0x8] sm:$0xff] %vm31, %v76
    // Predicated region
    $region18: #{tpu_custom_call.1} parent=1 // pred_check
      _
    $region19: #{tpu_custom_call.1} parent=1 // pred_check_branch
      %80 = sbr.rel (0) target = $region21
    $region20: #{tpu_custom_call.1} parent=1 // pred_region
      %s82 = ssub.s32 256, 256
      %83 = vsyncadd [#allocation4], %s82
      %s84 = sshll.u32 [#allocation5], 4
      %s85 = int_to_ptr.vmem [resolvable:$true] %s84
      %90 = dma.vmem_to_hbm [thread:$0]  %s85, 256, %s3, [#allocation4], 128, 128, 8
    $region21: #{tpu_custom_call.1} parent=1 // pred_fallthru
      _
    // Predicated region
    $region22: #{tpu_custom_call.1} parent=1 // pred_check
      _
    $region23: #{tpu_custom_call.1} parent=1 // pred_check_branch
      %92 = sbr.rel (0) target = $region25
    $region24: #{tpu_custom_call.1} parent=1 // pred_region
      %93 = dma.done [#allocation4], 256
    $region25: #{tpu_custom_call.1} parent=1 // pred_fallthru
      _
    %94 = vsyncpa [#allocation3], 1
    %95 = vsyncpa [#allocation4], 1

</llo_original>
